<compile_context>
chip_gen: v7x
topology: tpu7x:2x2x1
jax: 0.10.0
libtpu: 0.0.40
codegen_flags: <defaults>
</compile_context>

<pallas_src>
import jax
import jax.numpy as jnp
from jax.experimental import pallas as pl
from jax.experimental.pallas import tpu as pltpu

# ---- model hyper-parameters (small, consistent with the module) -------------
SMILES_NODES = 32          # smiles_nodes
LATENT_DIM = 16            # latent_dim
MIN_DIM = 32               # MIN_DIM
UNIQUE_CLASSES = 10        # unique_classes
BATCH = 4

SLAB_LANES = 128
ACT_LANES = 128

# activation lane layout: [ x (32) | z (16) | onehot (10) | pad->64 | eps (2) | pad ]
LANE_X = 0
LANE_Z = SMILES_NODES
LANE_OH = SMILES_NODES + LATENT_DIM
N_USED = SMILES_NODES + LATENT_DIM + UNIQUE_CLASSES   # 58
W1_K = 64
LANE_EPS = W1_K


def _pad8(n):
    return ((n + 7) // 8) * 8


# ---- weight-slab row layout (each entry starts at an 8-aligned row) ----------
_ROWS = {
    "w1": ACT_LANES,   # fused encoder-1 weight, padded to 128 rows (rows 58..127 zero)
    "e2w": MIN_DIM,
    "hw": LATENT_DIM,  # [mw | lw]   (latent, 4)
    "d1w": 2,          # decoder layer 1 weight (2, latent)
    "d2w": LATENT_DIM,
    "d3w": MIN_DIM,
    "bias": 8,         # shared bias block: one bias per row (6 rows used)
}
OFF = {}
_o = 0
for _k, _r in _ROWS.items():
    OFF[_k] = _o
    _o += _pad8(_r)
SLAB_ROWS = _o  # 240  (~120 KiB)

# rows inside the shared bias block
BROW_B1, BROW_E2B, BROW_HB, BROW_D1B, BROW_D2B, BROW_D3B = range(6)


def _leaky_relu(v):
    # nn.LeakyReLU(0.2)
    return jnp.where(v > 0, v, 0.2 * v)


def generator_kernel(act_ref, slab_ref, out_ref):
    f32 = jnp.float32
    act = act_ref[...]                                               # (Bp, 128)
    Bp = act.shape[0]

    # ---- static slices out of the single weight slab -------------------------
    w1 = slab_ref[OFF["w1"]:OFF["w1"] + ACT_LANES, :MIN_DIM]         # (128, 32)
    e2w = slab_ref[OFF["e2w"]:OFF["e2w"] + MIN_DIM, :LATENT_DIM]     # (32, 16)
    hw = slab_ref[OFF["hw"]:OFF["hw"] + LATENT_DIM, :4]              # (16, 4)
    d1w = slab_ref[OFF["d1w"]:OFF["d1w"] + 2, :LATENT_DIM]           # (2, 16)
    d2w = slab_ref[OFF["d2w"]:OFF["d2w"] + LATENT_DIM, :MIN_DIM]     # (16, 32)
    d3w = slab_ref[OFF["d3w"]:OFF["d3w"] + MIN_DIM, :SMILES_NODES]   # (32, 32)

    bias = slab_ref[OFF["bias"]:OFF["bias"] + 8, :]                  # (8, 128) one vreg
    b1 = bias[BROW_B1:BROW_B1 + 1, :MIN_DIM]                         # (1, 32)
    e2b = bias[BROW_E2B:BROW_E2B + 1, :LATENT_DIM]                   # (1, 16)
    hb = bias[BROW_HB:BROW_HB + 1, :4]                               # (1, 4)
    d1b = bias[BROW_D1B:BROW_D1B + 1, :LATENT_DIM]                   # (1, 16)
    d2b = bias[BROW_D2B:BROW_D2B + 1, :MIN_DIM]                      # (1, 32)
    d3b = bias[BROW_D3B:BROW_D3B + 1, :SMILES_NODES]                 # (1, 32)

    # ---- encoder layer 1: full 128-lane activation straight into the MXU -----
    # (rows 58..127 of w1 are zero, so pad lanes and the eps lanes contribute 0)
    h = _leaky_relu(jnp.dot(act, w1, preferred_element_type=f32) + b1)     # (Bp, 32)

    # ---- encoder layer 2 ------------------------------------------------------
    h = _leaky_relu(jnp.dot(h, e2w, preferred_element_type=f32) + e2b)     # (Bp, 16)

    # ---- fused mean/logvar head ----------------------------------------------
    head = jnp.dot(h, hw, preferred_element_type=f32) + hb                 # (Bp, 4)
    mean = head[:, 0:2]
    logvar = head[:, 2:4]

    # ---- reparameterization (matches module: z = mean + logvar * eps) --------
    eps = act[:, LANE_EPS:LANE_EPS + 2]                                    # (Bp, 2)
    z_lat = mean + logvar * eps                                            # (Bp, 2)

    # ---- decoder layers 1/2/3 (all MXU) ---------------------------------------
    d = _leaky_relu(jnp.dot(z_lat, d1w, preferred_element_type=f32) + d1b)   # (Bp, 16)
    d = _leaky_relu(jnp.dot(d, d2w, preferred_element_type=f32) + d2b)       # (Bp, 32)
    x_hat = jax.nn.sigmoid(jnp.dot(d, d3w, preferred_element_type=f32) + d3b)

    # ---- single unmasked lane-dense store: [x_hat | mean | logvar | zeros] ----
    out_ref[...] = jnp.concatenate(
        [x_hat, mean, logvar,
         jnp.zeros((Bp, ACT_LANES - SMILES_NODES - 4), f32)], axis=-1)


def init_params(key):
    """Deterministic synthetic parameters; weights are (in, out)."""
    keys = jax.random.split(key, 16)
    sc = 0.1
    f32 = jnp.float32
    p = {}
    p["emb_tbl"] = sc * jax.random.normal(keys[0], (UNIQUE_CLASSES, MIN_DIM), f32)
    p["emb_w"] = sc * jax.random.normal(keys[1], (MIN_DIM, SMILES_NODES), f32)
    p["emb_b"] = sc * jax.random.normal(keys[2], (1, SMILES_NODES), f32)
    # encoder layer 1 weight, split along its input dim [x | c | z]
    e1w = sc * jax.random.normal(
        keys[3], (2 * SMILES_NODES + LATENT_DIM, MIN_DIM), f32)
    p["e1w_x"] = e1w[:SMILES_NODES]
    p["e1w_c"] = e1w[SMILES_NODES:2 * SMILES_NODES]
    p["e1w_z"] = e1w[2 * SMILES_NODES:]
    p["e1b"] = sc * jax.random.normal(keys[4], (1, MIN_DIM), f32)
    p["e2w"] = sc * jax.random.normal(keys[5], (MIN_DIM, LATENT_DIM), f32)
    p["e2b"] = sc * jax.random.normal(keys[6], (1, LATENT_DIM), f32)
    p["mw"] = sc * jax.random.normal(keys[7], (LATENT_DIM, 2), f32)
    p["mb"] = sc * jax.random.normal(keys[8], (1, 2), f32)
    p["lw"] = sc * jax.random.normal(keys[9], (LATENT_DIM, 2), f32)
    p["lb"] = sc * jax.random.normal(keys[10], (1, 2), f32)
    p["d1w"] = sc * jax.random.normal(keys[11], (2, LATENT_DIM), f32)
    p["d1b"] = sc * jax.random.normal(keys[12], (1, LATENT_DIM), f32)
    p["d2w"] = sc * jax.random.normal(keys[13], (LATENT_DIM, MIN_DIM), f32)
    p["d2b"] = sc * jax.random.normal(keys[14], (1, MIN_DIM), f32)
    p["d3w"] = sc * jax.random.normal(keys[15], (MIN_DIM, SMILES_NODES), f32)
    p["d3b"] = jnp.zeros((1, SMILES_NODES), f32)
    return p


def pack_params(p):
    """Host-side fold + pack of all parameters into one (SLAB_ROWS, 128) slab."""
    f32 = jnp.float32
    # Fold the label path:  onehot @ fused_lbl  ==  (emb_tbl[c] @ emb_w) @ e1w_c
    fused_lbl = (p["emb_tbl"] @ p["emb_w"]) @ p["e1w_c"]             # (U, MIN_DIM)
    # w1 padded to a full 128-row LHS so the whole activation vreg hits the MXU.
    w1 = jnp.concatenate(
        [p["e1w_x"], p["e1w_z"], fused_lbl,
         jnp.zeros((ACT_LANES - N_USED, MIN_DIM), f32)], axis=0)      # (128, MIN_DIM)
    b1 = p["e1b"] + p["emb_b"] @ p["e1w_c"]                           # (1, MIN_DIM)
    head_w = jnp.concatenate([p["mw"], p["lw"]], axis=1)              # (latent, 4)
    head_b = jnp.concatenate([p["mb"], p["lb"]], axis=1)              # (1, 4)

    weights = {
        "w1": w1,
        "e2w": p["e2w"],
        "hw": head_w,
        "d1w": p["d1w"],
        "d2w": p["d2w"],
        "d3w": p["d3w"],
    }
    slab = jnp.zeros((SLAB_ROWS, SLAB_LANES), f32)
    for name, arr in weights.items():
        r, c = arr.shape
        slab = slab.at[OFF[name]:OFF[name] + r, :c].set(arr.astype(f32))

    # shared bias block: one bias per row
    b0 = OFF["bias"]
    slab = slab.at[b0 + BROW_B1, :MIN_DIM].set(b1[0].astype(f32))
    slab = slab.at[b0 + BROW_E2B, :LATENT_DIM].set(p["e2b"][0].astype(f32))
    slab = slab.at[b0 + BROW_HB, :4].set(head_b[0].astype(f32))
    slab = slab.at[b0 + BROW_D1B, :LATENT_DIM].set(p["d1b"][0].astype(f32))
    slab = slab.at[b0 + BROW_D2B, :MIN_DIM].set(p["d2b"][0].astype(f32))
    slab = slab.at[b0 + BROW_D3B, :SMILES_NODES].set(p["d3b"][0].astype(f32))
    return slab


@jax.jit
def generator_forward(slab, c, x, z, eps):
    """Mirrors Generator.forward(c, x, z); eps is the N(0,1) noise of the
    reparameterization (passed in for determinism)."""
    f32 = jnp.float32
    B = x.shape[0]
    Bp = _pad8(B)                                           # pad batch to sublane mult.
    x2 = x.reshape(B, SMILES_NODES).astype(f32)             # x.view(B, smiles_nodes)
    z2 = z.reshape(B, LATENT_DIM).astype(f32)               # z.squeeze(1)
    eps2 = eps.reshape(B, 2).astype(f32)
    onehot = jax.nn.one_hot(c, UNIQUE_CLASSES, dtype=f32)   # (B, U)

    # single fused packed activation: [x | z | onehot | 0.. | eps | 0..]
    act = jnp.concatenate(
        [x2, z2, onehot,
         jnp.zeros((B, W1_K - N_USED), f32),
         eps2,
         jnp.zeros((B, ACT_LANES - W1_K - 2), f32)], axis=1)          # (B, 128)
    act = jnp.pad(act, ((0, Bp - B), (0, 0)))                         # (Bp, 128)

    # advisory cost estimate: tiny flops/bytes -> let XLA overlap around the call
    flops = 2 * Bp * (ACT_LANES * MIN_DIM + MIN_DIM * LATENT_DIM + LATENT_DIM * 4
                      + 2 * LATENT_DIM + LATENT_DIM * MIN_DIM + MIN_DIM * SMILES_NODES)
    bytes_accessed = 4 * (Bp * ACT_LANES + SLAB_ROWS * SLAB_LANES + Bp * ACT_LANES)
    cost = pl.CostEstimate(flops=flops, transcendentals=Bp * SMILES_NODES,
                           bytes_accessed=bytes_accessed)

    vmem_spec = pl.BlockSpec(memory_space=pltpu.MemorySpace.VMEM)
    out = pl.pallas_call(
        generator_kernel,
        out_shape=jax.ShapeDtypeStruct((Bp, ACT_LANES), f32),
        in_specs=[vmem_spec, vmem_spec],
        out_specs=vmem_spec,
        cost_estimate=cost,
    )(act, slab)

    x_hat = out[:B, 0:SMILES_NODES]
    mean = out[:B, SMILES_NODES:SMILES_NODES + 2]
    logvar = out[:B, SMILES_NODES + 2:SMILES_NODES + 4]
    return x_hat, mean, logvar


def reference_forward(params, c, x, z, eps):
    """Pure-JAX reference reproducing the PyTorch forward semantics."""
    B = x.shape[0]
    x2 = x.reshape(B, SMILES_NODES)
    z2 = z.reshape(B, LATENT_DIM)
    emb = params["emb_tbl"][c]                                  # (B, MIN_DIM)
    c_feat = emb @ params["emb_w"] + params["emb_b"]
    h = jnp.concatenate([x2, c_feat, z2], axis=1)
    e1w = jnp.concatenate([params["e1w_x"], params["e1w_c"], params["e1w_z"]], axis=0)
    h = jax.nn.leaky_relu(h @ e1w + params["e1b"], 0.2)
    h = jax.nn.leaky_relu(h @ params["e2w"] + params["e2b"], 0.2)
    mean = h @ params["mw"] + params["mb"]
    logvar = h @ params["lw"] + params["lb"]
    # NOTE: module uses z = mean + logvar * eps (no exp(0.5*logvar)); kept as-is.
    z_lat = mean + logvar * eps.reshape(B, 2)
    d = jax.nn.leaky_relu(z_lat @ params["d1w"] + params["d1b"], 0.2)
    d = jax.nn.leaky_relu(d @ params["d2w"] + params["d2b"], 0.2)
    x_hat = jax.nn.sigmoid(d @ params["d3w"] + params["d3b"])
    return x_hat, mean, logvar


if __name__ == "__main__":
    key = jax.random.PRNGKey(0)
    kp, kc, kx, kz, ke = jax.random.split(key, 5)

    params = init_params(kp)
    slab = pack_params(params)   # one-time host-side fold + pack

    # Inputs in their PyTorch-facing shapes.
    c = jax.random.randint(kc, (BATCH,), 0, UNIQUE_CLASSES)            # class labels
    x = jax.random.normal(kx, (BATCH, 1, SMILES_NODES), jnp.float32)   # smiles tensor
    z = jax.random.normal(kz, (BATCH, 1, LATENT_DIM), jnp.float32)     # latent noise
    # TODO(synk): epsilon is drawn inside reparameterization in the module
    # (torch.randn_like); passed explicitly here for determinism.
    eps = jax.random.normal(ke, (BATCH, 2), jnp.float32)               # reparam noise

    x_hat, mean, logvar = generator_forward(slab, c, x, z, eps)
    jax.block_until_ready((x_hat, mean, logvar))

    # sanity check against pure-JAX reference
    r_xhat, r_mean, r_logvar = reference_forward(params, c, x, z, eps)
    assert x_hat.shape == (BATCH, SMILES_NODES)
    assert mean.shape == (BATCH, 2) and logvar.shape == (BATCH, 2)
    assert jnp.allclose(x_hat, r_xhat, atol=1e-4, rtol=1e-4)
    assert jnp.allclose(mean, r_mean, atol=1e-4, rtol=1e-4)
    assert jnp.allclose(logvar, r_logvar, atol=1e-4, rtol=1e-4)

    print("KERNEL_OK")
</pallas_src>

<mosaic_0001>
module attributes {stable_mosaic.version = 11 : i64} {
  func.func @generator_kernel(%arg0: memref<8x128xf32, #tpu.memory_space<vmem>>, %arg1: memref<240x128xf32, #tpu.memory_space<vmem>>, %arg2: memref<8x128xf32, #tpu.memory_space<vmem>>) attributes {dimension_semantics = [], scalar_prefetch = 0 : i64, scratch_operands = 0 : i64, tpu.core_type = #tpu.core_type<tc>} {
    %c0 = arith.constant 0 : index
    %c0_0 = arith.constant 0 : index
    %0 = vector.load %arg0[%c0, %c0_0] : memref<8x128xf32, #tpu.memory_space<vmem>>, vector<8x128xf32>
    %c0_1 = arith.constant 0 : index
    %c0_2 = arith.constant 0 : index
    %1 = vector.load %arg1[%c0_1, %c0_2] : memref<240x128xf32, #tpu.memory_space<vmem>>, vector<128x32xf32>
    %c128 = arith.constant 128 : index
    %c0_3 = arith.constant 0 : index
    %2 = vector.load %arg1[%c128, %c0_3] : memref<240x128xf32, #tpu.memory_space<vmem>>, vector<32x16xf32>
    %c160 = arith.constant 160 : index
    %c0_4 = arith.constant 0 : index
    %3 = vector.load %arg1[%c160, %c0_4] : memref<240x128xf32, #tpu.memory_space<vmem>>, vector<16x4xf32>
    %c176 = arith.constant 176 : index
    %c0_5 = arith.constant 0 : index
    %4 = vector.load %arg1[%c176, %c0_5] : memref<240x128xf32, #tpu.memory_space<vmem>>, vector<2x16xf32>
    %c184 = arith.constant 184 : index
    %c0_6 = arith.constant 0 : index
    %5 = vector.load %arg1[%c184, %c0_6] : memref<240x128xf32, #tpu.memory_space<vmem>>, vector<16x32xf32>
    %c200 = arith.constant 200 : index
    %c0_7 = arith.constant 0 : index
    %6 = vector.load %arg1[%c200, %c0_7] : memref<240x128xf32, #tpu.memory_space<vmem>>, vector<32x32xf32>
    %c232 = arith.constant 232 : index
    %c0_8 = arith.constant 0 : index
    %7 = vector.load %arg1[%c232, %c0_8] : memref<240x128xf32, #tpu.memory_space<vmem>>, vector<8x128xf32>
    %8 = vector.extract_strided_slice %7 {offsets = [0, 0], sizes = [1, 32], strides = [1, 1]} : vector<8x128xf32> to vector<1x32xf32>
    %9 = vector.extract_strided_slice %7 {offsets = [1, 0], sizes = [1, 16], strides = [1, 1]} : vector<8x128xf32> to vector<1x16xf32>
    %10 = vector.extract_strided_slice %7 {offsets = [2, 0], sizes = [1, 4], strides = [1, 1]} : vector<8x128xf32> to vector<1x4xf32>
    %11 = vector.extract_strided_slice %7 {offsets = [3, 0], sizes = [1, 16], strides = [1, 1]} : vector<8x128xf32> to vector<1x16xf32>
    %12 = vector.extract_strided_slice %7 {offsets = [4, 0], sizes = [1, 32], strides = [1, 1]} : vector<8x128xf32> to vector<1x32xf32>
    %13 = vector.extract_strided_slice %7 {offsets = [5, 0], sizes = [1, 32], strides = [1, 1]} : vector<8x128xf32> to vector<1x32xf32>
    %cst = arith.constant dense<0.000000e+00> : vector<8x32xf32>
    %14 = tpu.matmul %0, %1, %cst {dimension_numbers = #tpu.dot_dimension_numbers<[1], [0], [0], [1], [0, 0, 1, 1], [], []>} : vector<8x128xf32>, vector<128x32xf32>, vector<8x32xf32> -> vector<8x32xf32>
    %15 = vector.broadcast %8 : vector<1x32xf32> to vector<8x32xf32>
    %16 = arith.addf %14, %15 : vector<8x32xf32>
    %cst_9 = arith.constant 0.000000e+00 : f32
    %17 = vector.broadcast %cst_9 : f32 to vector<8x32xf32>
    %18 = arith.cmpf ogt, %16, %17 : vector<8x32xf32>
    %cst_10 = arith.constant 2.000000e-01 : f32
    %19 = vector.broadcast %cst_10 : f32 to vector<8x32xf32>
    %20 = arith.mulf %19, %16 : vector<8x32xf32>
    %21 = arith.select %18, %16, %20 : vector<8x32xi1>, vector<8x32xf32>
    %cst_11 = arith.constant dense<0.000000e+00> : vector<8x16xf32>
    %22 = tpu.matmul %21, %2, %cst_11 {dimension_numbers = #tpu.dot_dimension_numbers<[1], [0], [0], [1], [0, 0, 1, 1], [], []>} : vector<8x32xf32>, vector<32x16xf32>, vector<8x16xf32> -> vector<8x16xf32>
    %23 = vector.broadcast %9 : vector<1x16xf32> to vector<8x16xf32>
    %24 = arith.addf %22, %23 : vector<8x16xf32>
    %cst_12 = arith.constant 0.000000e+00 : f32
    %25 = vector.broadcast %cst_12 : f32 to vector<8x16xf32>
    %26 = arith.cmpf ogt, %24, %25 : vector<8x16xf32>
    %cst_13 = arith.constant 2.000000e-01 : f32
    %27 = vector.broadcast %cst_13 : f32 to vector<8x16xf32>
    %28 = arith.mulf %27, %24 : vector<8x16xf32>
    %29 = arith.select %26, %24, %28 : vector<8x16xi1>, vector<8x16xf32>
    %cst_14 = arith.constant dense<0.000000e+00> : vector<8x4xf32>
    %30 = tpu.matmul %29, %3, %cst_14 {dimension_numbers = #tpu.dot_dimension_numbers<[1], [0], [0], [1], [0, 0, 1, 1], [], []>} : vector<8x16xf32>, vector<16x4xf32>, vector<8x4xf32> -> vector<8x4xf32>
    %31 = vector.broadcast %10 : vector<1x4xf32> to vector<8x4xf32>
    %32 = arith.addf %30, %31 : vector<8x4xf32>
    %33 = vector.extract_strided_slice %32 {offsets = [0, 0], sizes = [8, 2], strides = [1, 1]} : vector<8x4xf32> to vector<8x2xf32>
    %34 = vector.extract_strided_slice %32 {offsets = [0, 2], sizes = [8, 2], strides = [1, 1]} : vector<8x4xf32> to vector<8x2xf32>
    %35 = vector.extract_strided_slice %0 {offsets = [0, 64], sizes = [8, 2], strides = [1, 1]} : vector<8x128xf32> to vector<8x2xf32>
    %36 = arith.mulf %34, %35 : vector<8x2xf32>
    %37 = arith.addf %33, %36 : vector<8x2xf32>
    %cst_15 = arith.constant dense<0.000000e+00> : vector<8x16xf32>
    %38 = tpu.matmul %37, %4, %cst_15 {dimension_numbers = #tpu.dot_dimension_numbers<[1], [0], [0], [1], [0, 0, 1, 1], [], []>} : vector<8x2xf32>, vector<2x16xf32>, vector<8x16xf32> -> vector<8x16xf32>
    %39 = vector.broadcast %11 : vector<1x16xf32> to vector<8x16xf32>
    %40 = arith.addf %38, %39 : vector<8x16xf32>
    %cst_16 = arith.constant 0.000000e+00 : f32
    %41 = vector.broadcast %cst_16 : f32 to vector<8x16xf32>
    %42 = arith.cmpf ogt, %40, %41 : vector<8x16xf32>
    %cst_17 = arith.constant 2.000000e-01 : f32
    %43 = vector.broadcast %cst_17 : f32 to vector<8x16xf32>
    %44 = arith.mulf %43, %40 : vector<8x16xf32>
    %45 = arith.select %42, %40, %44 : vector<8x16xi1>, vector<8x16xf32>
    %cst_18 = arith.constant dense<0.000000e+00> : vector<8x32xf32>
    %46 = tpu.matmul %45, %5, %cst_18 {dimension_numbers = #tpu.dot_dimension_numbers<[1], [0], [0], [1], [0, 0, 1, 1], [], []>} : vector<8x16xf32>, vector<16x32xf32>, vector<8x32xf32> -> vector<8x32xf32>
    %47 = vector.broadcast %12 : vector<1x32xf32> to vector<8x32xf32>
    %48 = arith.addf %46, %47 : vector<8x32xf32>
    %cst_19 = arith.constant 0.000000e+00 : f32
    %49 = vector.broadcast %cst_19 : f32 to vector<8x32xf32>
    %50 = arith.cmpf ogt, %48, %49 : vector<8x32xf32>
    %cst_20 = arith.constant 2.000000e-01 : f32
    %51 = vector.broadcast %cst_20 : f32 to vector<8x32xf32>
    %52 = arith.mulf %51, %48 : vector<8x32xf32>
    %53 = arith.select %50, %48, %52 : vector<8x32xi1>, vector<8x32xf32>
    %cst_21 = arith.constant dense<0.000000e+00> : vector<8x32xf32>
    %54 = tpu.matmul %53, %6, %cst_21 {dimension_numbers = #tpu.dot_dimension_numbers<[1], [0], [0], [1], [0, 0, 1, 1], [], []>} : vector<8x32xf32>, vector<32x32xf32>, vector<8x32xf32> -> vector<8x32xf32>
    %55 = vector.broadcast %13 : vector<1x32xf32> to vector<8x32xf32>
    %56 = arith.addf %54, %55 : vector<8x32xf32>
    %57 = arith.negf %56 : vector<8x32xf32>
    %58 = math.exp %57 : vector<8x32xf32>
    %cst_22 = arith.constant 1.000000e+00 : f32
    %59 = vector.broadcast %cst_22 : f32 to vector<8x32xf32>
    %60 = arith.addf %59, %58 : vector<8x32xf32>
    %61 = arith.divf %59, %60 : vector<8x32xf32>
    %cst_23 = arith.constant 0.000000e+00 : f32
    %62 = vector.broadcast %cst_23 : f32 to vector<8x92xf32>
    %63 = tpu.concatenate %61, %33, %34, %62 in 1 : vector<8x32xf32>, vector<8x2xf32>, vector<8x2xf32>, vector<8x92xf32> -> vector<8x128xf32>
    %c0_24 = arith.constant 0 : index
    %c0_25 = arith.constant 0 : index
    %64 = vector.load %arg2[%c0_24, %c0_25] : memref<8x128xf32, #tpu.memory_space<vmem>>, vector<8x128xf32>
    tpu.vector_store %arg2[%c0_24, %c0_25], %63 {strides = array<i32>} : memref<8x128xf32, #tpu.memory_space<vmem>>, vector<8x128xf32>,
    return
  }
}

</mosaic_0001>

<llo_original>
// kernel: generator_forward.1
$region0: #{generator_forward.1}
  #allocation0 [shape = 'u32[]', space=smem, size = 0x4, offset = 0x4, fixed_abs, tag = 'smem constant byte address 0x4 - core index']
  #allocation1 [shape = 'u32[144,128]{1,0:T(1,128)}', space=vmem, size = 0x12000, scoped, tag = 'internal scratch']
  %s0 = inlined_call_operand.vmem [shape: f32[8,128], index: 0, kind: input, shape index: {}]
  %s1 = inlined_call_operand.hbm [shape: f32[240,128], index: 1, kind: input, shape index: {}]
  %s2 = inlined_call_operand.vmem [shape: f32[8,128], index: 2, kind: output, shape index: {}]
  %s3 = sld [smem:[#allocation0]]
  $region22: #{generator_forward.1} parent=0
    _
  %s5 = ssub.s32 1, %s3
  %s6 = scalar_select 0, %s5, %s3
  $region1: #{generator_forward.1} parent=0
    #allocation2 [shape = 'u8[122880]{0}', space=vmem, size = 0x1e000, scoped, tag = 'input window, operand 1, single buffered']
    #allocation3 [shape = 's32[1]{0}', space=sflag, size = 0x4, scoped, tag = 'scoped memory for generator_forward.1']
    %7 = vsyncpa [#allocation3], 0
    // Predicated region
    $region2: #{generator_forward.1} parent=1 // pred_check
      _
    $region3: #{generator_forward.1} parent=1 // pred_check_branch
      %9 = sbr.rel (0) target = $region5
    $region4: #{generator_forward.1} parent=1 // pred_region
      _
    $region5: #{generator_forward.1} parent=1 // pred_fallthru
      _
    // Predicated region
    $region6: #{generator_forward.1} parent=1 // pred_check
      _
    $region7: #{generator_forward.1} parent=1 // pred_check_branch
      %11 = sbr.rel (0) target = $region9
    $region8: #{generator_forward.1} parent=1 // pred_region
      %s13 = ssub.s32 3840, 3840
      %14 = vsyncadd [#allocation3], %s13
      %s15 = sshll.u32 [#allocation2], 4
      %s16 = int_to_ptr.vmem [resolvable:$true] %s15
      %21 = dma.hbm_to_vmem [thread:$0]  %s1, 3840, %s16, [#allocation3], 128, 128, 8
    $region9: #{generator_forward.1} parent=1 // pred_fallthru
      _
    // Predicated region
    $region10: #{generator_forward.1} parent=1 // pred_check
      _
    $region11: #{generator_forward.1} parent=1 // pred_check_branch
      %23 = sbr.rel (0) target = $region13
    $region12: #{generator_forward.1} parent=1 // pred_region
      %24 = dma.done [#allocation3], 3840
    $region13: #{generator_forward.1} parent=1 // pred_fallthru
      _
    %v25 = vld [vmem:[%s0] sm:$0xff]
    %v26 = vld [vmem:[#allocation2] sm:$0xff]
    %v27 = vld [vmem:[#allocation2 + $0x8] sm:$0xff]
    %v28 = vld [vmem:[#allocation2 + $0x10] sm:$0xff]
    %v29 = vld [vmem:[#allocation2 + $0x18] sm:$0xff]
    %v30 = vld [vmem:[#allocation2 + $0x20] sm:$0xff]
    %v31 = vld [vmem:[#allocation2 + $0x28] sm:$0xff]
    %v32 = vld [vmem:[#allocation2 + $0x30] sm:$0xff]
    %v33 = vld [vmem:[#allocation2 + $0x38] sm:$0xff]
    %v34 = vld [vmem:[#allocation2 + $0x40] sm:$0xff]
    %v35 = vld [vmem:[#allocation2 + $0x48] sm:$0xff]
    %v36 = vld [vmem:[#allocation2 + $0x50] sm:$0xff]
    %v37 = vld [vmem:[#allocation2 + $0x58] sm:$0xff]
    %v38 = vld [vmem:[#allocation2 + $0x60] sm:$0xff]
    %v39 = vld [vmem:[#allocation2 + $0x68] sm:$0xff]
    %v40 = vld [vmem:[#allocation2 + $0x70] sm:$0xff]
    %v41 = vld [vmem:[#allocation2 + $0x78] sm:$0xff]
    %v42 = vld [vmem:[#allocation2 + $0x80] sm:$0xff]
    %v43 = vld [vmem:[#allocation2 + $0x88] sm:$0xff]
    %v44 = vld [vmem:[#allocation2 + $0x90] sm:$0xff]
    %v45 = vld [vmem:[#allocation2 + $0x98] sm:$0xff]
    %v46 = vld [vmem:[#allocation2 + $0xa0] sm:$0xff]
    %v47 = vld [vmem:[#allocation2 + $0xa8] sm:$0xff]
    %v48 = vld [vmem:[#allocation2 + $0xb0] sm:$0x3]
    %v49 = vld [vmem:[#allocation2 + $0xb8] sm:$0xff]
    %v50 = vld [vmem:[#allocation2 + $0xc0] sm:$0xff]
    %v51 = vld [vmem:[#allocation2 + $0xc8] sm:$0xff]
    %v52 = vld [vmem:[#allocation2 + $0xd0] sm:$0xff]
    %v53 = vld [vmem:[#allocation2 + $0xd8] sm:$0xff]
    %v54 = vld [vmem:[#allocation2 + $0xe0] sm:$0xff]
    %v55 = vld [vmem:[#allocation2 + $0xe8] sm:$0xff]
    %v56 = vlaneseq
    %v57 = vshrl.u32 %v56, 7
    %v58 = vsub.s32 0, %v57
    %v59 = vrot.slane %v55, %v58
    %60 = vmatprep.subr.mxu0 0.0
    %61 = vmatpush1.msra.mxu0 %v26
    %62 = vmatprep.subr.mxu0 0.0
    %63 = vmatpush1.msra.mxu0 %v27
    %64 = vmatprep.subr.mxu0 0.0
    %65 = vmatpush1.msra.mxu0 %v28
    %66 = vmatprep.subr.mxu0 0.0
    %67 = vmatpush1.msra.mxu0 %v29
    %68 = vmatprep.subr.mxu0 0.0
    %69 = vmatpush1.msra.mxu0 %v30
    %70 = vmatprep.subr.mxu0 0.0
    %71 = vmatpush1.msra.mxu0 %v31
    %72 = vmatprep.subr.mxu0 0.0
    %73 = vmatpush1.msra.mxu0 %v32
    %74 = vmatprep.subr.mxu0 0.0
    %75 = vmatpush1.msra.mxu0 %v33
    %76 = vmatprep.subr.mxu0 0.0
    %77 = vmatpush1.msra.mxu0 %v34
    %78 = vmatprep.subr.mxu0 0.0
    %79 = vmatpush1.msra.mxu0 %v35
    %80 = vmatprep.subr.mxu0 0.0
    %81 = vmatpush1.msra.mxu0 %v36
    %82 = vmatprep.subr.mxu0 0.0
    %83 = vmatpush1.msra.mxu0 %v37
    %84 = vmatprep.subr.mxu0 0.0
    %85 = vmatpush1.msra.mxu0 %v38
    %86 = vmatprep.subr.mxu0 0.0
    %87 = vmatpush1.msra.mxu0 %v39
    %88 = vmatprep.subr.mxu0 0.0
    %89 = vmatpush1.msra.mxu0 %v40
    %90 = vmatprep.subr.mxu0 0.0
    %91 = vmatpush1.msra.mxu0 %v41
    %92 = vmatprep.subr.mxu0 0.0
    %93 = vmatpush1.msra.mxu0 0.0
    %94 = vmatprep.subr.mxu0 0.0
    %95 = vmatpush1.msra.mxu0 0.0
    %96 = vmatprep.subr.mxu0 0.0
    %97 = vmatpush1.msra.mxu0 0.0
    %98 = vmatprep.subr.mxu0 0.0
    %99 = vmatpush1.msra.mxu0 0.0
    %100 = vmatprep.subr.mxu0 0.0
    %101 = vmatpush1.msra.mxu0 0.0
    %102 = vmatprep.subr.mxu0 0.0
    %103 = vmatpush1.msra.mxu0 0.0
    %104 = vmatprep.subr.mxu0 0.0
    %105 = vmatpush1.msra.mxu0 0.0
    %106 = vmatprep.subr.mxu0 0.0
    %107 = vmatpush1.msra.mxu0 0.0
    %108 = vmatprep.subr.mxu0 0.0
    %109 = vmatpush1.msra.mxu0 0.0
    %110 = vmatprep.subr.mxu0 0.0
    %111 = vmatpush1.msra.mxu0 0.0
    %112 = vmatprep.subr.mxu0 0.0
    %113 = vmatpush1.msra.mxu0 0.0
    %114 = vmatprep.subr.mxu0 0.0
    %115 = vmatpush1.msra.mxu0 0.0
    %116 = vmatprep.subr.mxu0 0.0
    %117 = vmatpush1.msra.mxu0 0.0
    %118 = vmatprep.subr.mxu0 0.0
    %119 = vmatpush1.msra.mxu0 0.0
    %120 = vmatprep.subr.mxu0 0.0
    %121 = vmatpush1.msra.mxu0 0.0
    %122 = vmatprep.subr.mxu0 0.0
    %123 = vmatpush1.msra.mxu0 0.0
    %124 = vmatprep.mubr.f32.mxu0 0.0
    %125 = vmatmul.mubr.f32.gmra.mrb[0].mxu0 %v25
    %v126 = vpop.f32.mrb[0].mxu0
    %v127 = vadd.f32 %v59, %v126
    %v128 = vpop.f32.mrb[0].mxu0
    %129 = vdwg.mxu0
    %vm130 = vcmp.gt.f32.partialorder %v127, 0.0
    %v131 = vmul.f32 %v127, 0.2
    %v132 = vsel %vm130, %v127, %v131
    %v133 = vlaneseq
    %v134 = vshrl.u32 %v133, 7
    %v135 = vsub.s32 1, %v134
    %v136 = vrot.slane %v55, %v135
    %vm137 = vcmask 261120
    %v139 = vsel %vm137, %v132, 0
    %141 = vmatprep.subr.mxu0 0.0
    %142 = vmatpush1.msra.mxu0 %v42
    %143 = vmatprep.subr.mxu0 0.0
    %144 = vmatpush1.msra.mxu0 %v43
    %145 = vmatprep.subr.mxu0 0.0
    %146 = vmatpush1.msra.mxu0 %v44
    %147 = vmatprep.subr.mxu0 0.0
    %148 = vmatpush1.msra.mxu0 %v45
    %149 = vmatprep.subr.mxu0 0.0
    %150 = vmatpush1.msra.mxu0 0.0
    %151 = vmatprep.subr.mxu0 0.0
    %152 = vmatpush1.msra.mxu0 0.0
    %153 = vmatprep.subr.mxu0 0.0
    %154 = vmatpush1.msra.mxu0 0.0
    %155 = vmatprep.subr.mxu0 0.0
    %156 = vmatpush1.msra.mxu0 0.0
    %157 = vmatprep.subr.mxu0 0.0
    %158 = vmatpush1.msra.mxu0 0.0
    %159 = vmatprep.subr.mxu0 0.0
    %160 = vmatpush1.msra.mxu0 0.0
    %161 = vmatprep.subr.mxu0 0.0
    %162 = vmatpush1.msra.mxu0 0.0
    %163 = vmatprep.subr.mxu0 0.0
    %164 = vmatpush1.msra.mxu0 0.0
    %165 = vmatprep.subr.mxu0 0.0
    %166 = vmatpush1.msra.mxu0 0.0
    %167 = vmatprep.subr.mxu0 0.0
    %168 = vmatpush1.msra.mxu0 0.0
    %169 = vmatprep.subr.mxu0 0.0
    %170 = vmatpush1.msra.mxu0 0.0
    %171 = vmatprep.subr.mxu0 0.0
    %172 = vmatpush1.msra.mxu0 0.0
    %173 = vmatprep.subr.mxu0 0.0
    %174 = vmatpush1.msra.mxu0 0.0
    %175 = vmatprep.subr.mxu0 0.0
    %176 = vmatpush1.msra.mxu0 0.0
    %177 = vmatprep.subr.mxu0 0.0
    %178 = vmatpush1.msra.mxu0 0.0
    %179 = vmatprep.subr.mxu0 0.0
    %180 = vmatpush1.msra.mxu0 0.0
    %181 = vmatprep.subr.mxu0 0.0
    %182 = vmatpush1.msra.mxu0 0.0
    %183 = vmatprep.subr.mxu0 0.0
    %184 = vmatpush1.msra.mxu0 0.0
    %185 = vmatprep.subr.mxu0 0.0
    %186 = vmatpush1.msra.mxu0 0.0
    %187 = vmatprep.subr.mxu0 0.0
    %188 = vmatpush1.msra.mxu0 0.0
    %189 = vmatprep.subr.mxu0 0.0
    %190 = vmatpush1.msra.mxu0 0.0
    %191 = vmatprep.subr.mxu0 0.0
    %192 = vmatpush1.msra.mxu0 0.0
    %193 = vmatprep.subr.mxu0 0.0
    %194 = vmatpush1.msra.mxu0 0.0
    %195 = vmatprep.subr.mxu0 0.0
    %196 = vmatpush1.msra.mxu0 0.0
    %197 = vmatprep.subr.mxu0 0.0
    %198 = vmatpush1.msra.mxu0 0.0
    %199 = vmatprep.subr.mxu0 0.0
    %200 = vmatpush1.msra.mxu0 0.0
    %201 = vmatprep.subr.mxu0 0.0
    %202 = vmatpush1.msra.mxu0 0.0
    %203 = vmatprep.subr.mxu0 0.0
    %204 = vmatpush1.msra.mxu0 0.0
    %205 = vmatprep.mubr.f32.mxu0 0.0
    %206 = vmatmul.mubr.f32.gmra.mrb[0].mxu0 %v139
    %v207 = vpop.f32.mrb[0].mxu0
    %v208 = vadd.f32 %v136, %v207
    %v209 = vpop.f32.mrb[0].mxu0
    %210 = vdwg.mxu0
    %vm211 = vcmp.gt.f32.partialorder %v208, 0.0
    %v212 = vmul.f32 %v208, 0.2
    %v213 = vsel %vm211, %v208, %v212
    %v214 = vlaneseq
    %v215 = vshrl.u32 %v214, 7
    %v216 = vsub.s32 2, %v215
    %v217 = vrot.slane %v55, %v216
    %vm218 = vcmask 130048
    %v220 = vsel %vm218, %v213, 0
    %222 = vmatprep.subr.mxu0 0.0
    %223 = vmatpush1.msra.mxu0 %v46
    %224 = vmatprep.subr.mxu0 0.0
    %225 = vmatpush1.msra.mxu0 %v47
    %226 = vmatprep.subr.mxu0 0.0
    %227 = vmatpush1.msra.mxu0 0.0
    %228 = vmatprep.subr.mxu0 0.0
    %229 = vmatpush1.msra.mxu0 0.0
    %230 = vmatprep.subr.mxu0 0.0
    %231 = vmatpush1.msra.mxu0 0.0
    %232 = vmatprep.subr.mxu0 0.0
    %233 = vmatpush1.msra.mxu0 0.0
    %234 = vmatprep.subr.mxu0 0.0
    %235 = vmatpush1.msra.mxu0 0.0
    %236 = vmatprep.subr.mxu0 0.0
    %237 = vmatpush1.msra.mxu0 0.0
    %238 = vmatprep.subr.mxu0 0.0
    %239 = vmatpush1.msra.mxu0 0.0
    %240 = vmatprep.subr.mxu0 0.0
    %241 = vmatpush1.msra.mxu0 0.0
    %242 = vmatprep.subr.mxu0 0.0
    %243 = vmatpush1.msra.mxu0 0.0
    %244 = vmatprep.subr.mxu0 0.0
    %245 = vmatpush1.msra.mxu0 0.0
    %246 = vmatprep.subr.mxu0 0.0
    %247 = vmatpush1.msra.mxu0 0.0
    %248 = vmatprep.subr.mxu0 0.0
    %249 = vmatpush1.msra.mxu0 0.0
    %250 = vmatprep.subr.mxu0 0.0
    %251 = vmatpush1.msra.mxu0 0.0
    %252 = vmatprep.subr.mxu0 0.0
    %253 = vmatpush1.msra.mxu0 0.0
    %254 = vmatprep.subr.mxu0 0.0
    %255 = vmatpush1.msra.mxu0 0.0
    %256 = vmatprep.subr.mxu0 0.0
    %257 = vmatpush1.msra.mxu0 0.0
    %258 = vmatprep.subr.mxu0 0.0
    %259 = vmatpush1.msra.mxu0 0.0
    %260 = vmatprep.subr.mxu0 0.0
    %261 = vmatpush1.msra.mxu0 0.0
    %262 = vmatprep.subr.mxu0 0.0
    %263 = vmatpush1.msra.mxu0 0.0
    %264 = vmatprep.subr.mxu0 0.0
    %265 = vmatpush1.msra.mxu0 0.0
    %266 = vmatprep.subr.mxu0 0.0
    %267 = vmatpush1.msra.mxu0 0.0
    %268 = vmatprep.subr.mxu0 0.0
    %269 = vmatpush1.msra.mxu0 0.0
    %270 = vmatprep.subr.mxu0 0.0
    %271 = vmatpush1.msra.mxu0 0.0
    %272 = vmatprep.subr.mxu0 0.0
    %273 = vmatpush1.msra.mxu0 0.0
    %274 = vmatprep.subr.mxu0 0.0
    %275 = vmatpush1.msra.mxu0 0.0
    %276 = vmatprep.subr.mxu0 0.0
    %277 = vmatpush1.msra.mxu0 0.0
    %278 = vmatprep.subr.mxu0 0.0
    %279 = vmatpush1.msra.mxu0 0.0
    %280 = vmatprep.subr.mxu0 0.0
    %281 = vmatpush1.msra.mxu0 0.0
    %282 = vmatprep.subr.mxu0 0.0
    %283 = vmatpush1.msra.mxu0 0.0
    %284 = vmatprep.subr.mxu0 0.0
    %285 = vmatpush1.msra.mxu0 0.0
    %286 = vmatprep.mubr.f32.mxu0 0.0
    %287 = vmatmul.mubr.f32.gmra.mrb[0].mxu0 %v220
    %v288 = vpop.f32.mrb[0].mxu0
    %v289 = vadd.f32 %v217, %v288
    %v290 = vpop.f32.mrb[0].mxu0
    %291 = vdwg.mxu0
    %293 = vrot.lane.b32.xlu0 %v25, 66
    %v294 = vpop.permute.xlu0 %293
    %v296 = vmul.f32 %v289, %v294
    %298 = vrot.lane.b32.xlu0 %v296, 126
    %v299 = vpop.permute.xlu0 %298
    %v301 = vadd.f32 %v289, %v299
    %v302 = vlaneseq
    %v303 = vshrl.u32 %v302, 7
    %v304 = vsub.s32 3, %v303
    %v305 = vrot.slane %v55, %v304
    %vm306 = vcmask 15360
    %v308 = vsel %vm306, %v301, 0
    %vm310 = vcmask 1041408
    %v312 = vsel %vm310, %v48, 0
    %314 = vmatprep.subr.mxu0 0.0
    %315 = vmatpush1.msra.mxu0 %v312
    %316 = vmatprep.subr.mxu0 0.0
    %317 = vmatpush1.msra.mxu0 0.0
    %318 = vmatprep.subr.mxu0 0.0
    %319 = vmatpush1.msra.mxu0 0.0
    %320 = vmatprep.subr.mxu0 0.0
    %321 = vmatpush1.msra.mxu0 0.0
    %322 = vmatprep.subr.mxu0 0.0
    %323 = vmatpush1.msra.mxu0 0.0
    %324 = vmatprep.subr.mxu0 0.0
    %325 = vmatpush1.msra.mxu0 0.0
    %326 = vmatprep.subr.mxu0 0.0
    %327 = vmatpush1.msra.mxu0 0.0
    %328 = vmatprep.subr.mxu0 0.0
    %329 = vmatpush1.msra.mxu0 0.0
    %330 = vmatprep.subr.mxu0 0.0
    %331 = vmatpush1.msra.mxu0 0.0
    %332 = vmatprep.subr.mxu0 0.0
    %333 = vmatpush1.msra.mxu0 0.0
    %334 = vmatprep.subr.mxu0 0.0
    %335 = vmatpush1.msra.mxu0 0.0
    %336 = vmatprep.subr.mxu0 0.0
    %337 = vmatpush1.msra.mxu0 0.0
    %338 = vmatprep.subr.mxu0 0.0
    %339 = vmatpush1.msra.mxu0 0.0
    %340 = vmatprep.subr.mxu0 0.0
    %341 = vmatpush1.msra.mxu0 0.0
    %342 = vmatprep.subr.mxu0 0.0
    %343 = vmatpush1.msra.mxu0 0.0
    %344 = vmatprep.subr.mxu0 0.0
    %345 = vmatpush1.msra.mxu0 0.0
    %346 = vmatprep.subr.mxu0 0.0
    %347 = vmatpush1.msra.mxu0 0.0
    %348 = vmatprep.subr.mxu0 0.0
    %349 = vmatpush1.msra.mxu0 0.0
    %350 = vmatprep.subr.mxu0 0.0
    %351 = vmatpush1.msra.mxu0 0.0
    %352 = vmatprep.subr.mxu0 0.0
    %353 = vmatpush1.msra.mxu0 0.0
    %354 = vmatprep.subr.mxu0 0.0
    %355 = vmatpush1.msra.mxu0 0.0
    %356 = vmatprep.subr.mxu0 0.0
    %357 = vmatpush1.msra.mxu0 0.0
    %358 = vmatprep.subr.mxu0 0.0
    %359 = vmatpush1.msra.mxu0 0.0
    %360 = vmatprep.subr.mxu0 0.0
    %361 = vmatpush1.msra.mxu0 0.0
    %362 = vmatprep.subr.mxu0 0.0
    %363 = vmatpush1.msra.mxu0 0.0
    %364 = vmatprep.subr.mxu0 0.0
    %365 = vmatpush1.msra.mxu0 0.0
    %366 = vmatprep.subr.mxu0 0.0
    %367 = vmatpush1.msra.mxu0 0.0
    %368 = vmatprep.subr.mxu0 0.0
    %369 = vmatpush1.msra.mxu0 0.0
    %370 = vmatprep.subr.mxu0 0.0
    %371 = vmatpush1.msra.mxu0 0.0
    %372 = vmatprep.subr.mxu0 0.0
    %373 = vmatpush1.msra.mxu0 0.0
    %374 = vmatprep.subr.mxu0 0.0
    %375 = vmatpush1.msra.mxu0 0.0
    %376 = vmatprep.subr.mxu0 0.0
    %377 = vmatpush1.msra.mxu0 0.0
    %378 = vmatprep.mubr.f32.mxu0 0.0
    %379 = vmatmul.mubr.f32.gmra.mrb[0].mxu0 %v308
    %v380 = vpop.f32.mrb[0].mxu0
    %v381 = vadd.f32 %v305, %v380
    %v382 = vpop.f32.mrb[0].mxu0
    %383 = vdwg.mxu0
    %vm384 = vcmp.gt.f32.partialorder %v381, 0.0
    %v385 = vmul.f32 %v381, 0.2
    %v386 = vsel %vm384, %v381, %v385
    %v387 = vlaneseq
    %v388 = vshrl.u32 %v387, 7
    %v389 = vsub.s32 4, %v388
    %v390 = vrot.slane %v55, %v389
    %v392 = vsel %vm218, %v386, 0
    %394 = vmatprep.subr.mxu0 0.0
    %395 = vmatpush1.msra.mxu0 %v49
    %396 = vmatprep.subr.mxu0 0.0
    %397 = vmatpush1.msra.mxu0 %v50
    %398 = vmatprep.subr.mxu0 0.0
    %399 = vmatpush1.msra.mxu0 0.0
    %400 = vmatprep.subr.mxu0 0.0
    %401 = vmatpush1.msra.mxu0 0.0
    %402 = vmatprep.subr.mxu0 0.0
    %403 = vmatpush1.msra.mxu0 0.0
    %404 = vmatprep.subr.mxu0 0.0
    %405 = vmatpush1.msra.mxu0 0.0
    %406 = vmatprep.subr.mxu0 0.0
    %407 = vmatpush1.msra.mxu0 0.0
    %408 = vmatprep.subr.mxu0 0.0
    %409 = vmatpush1.msra.mxu0 0.0
    %410 = vmatprep.subr.mxu0 0.0
    %411 = vmatpush1.msra.mxu0 0.0
    %412 = vmatprep.subr.mxu0 0.0
    %413 = vmatpush1.msra.mxu0 0.0
    %414 = vmatprep.subr.mxu0 0.0
    %415 = vmatpush1.msra.mxu0 0.0
    %416 = vmatprep.subr.mxu0 0.0
    %417 = vmatpush1.msra.mxu0 0.0
    %418 = vmatprep.subr.mxu0 0.0
    %419 = vmatpush1.msra.mxu0 0.0
    %420 = vmatprep.subr.mxu0 0.0
    %421 = vmatpush1.msra.mxu0 0.0
    %422 = vmatprep.subr.mxu0 0.0
    %423 = vmatpush1.msra.mxu0 0.0
    %424 = vmatprep.subr.mxu0 0.0
    %425 = vmatpush1.msra.mxu0 0.0
    %426 = vmatprep.subr.mxu0 0.0
    %427 = vmatpush1.msra.mxu0 0.0
    %428 = vmatprep.subr.mxu0 0.0
    %429 = vmatpush1.msra.mxu0 0.0
    %430 = vmatprep.subr.mxu0 0.0
    %431 = vmatpush1.msra.mxu0 0.0
    %432 = vmatprep.subr.mxu0 0.0
    %433 = vmatpush1.msra.mxu0 0.0
    %434 = vmatprep.subr.mxu0 0.0
    %435 = vmatpush1.msra.mxu0 0.0
    %436 = vmatprep.subr.mxu0 0.0
    %437 = vmatpush1.msra.mxu0 0.0
    %438 = vmatprep.subr.mxu0 0.0
    %439 = vmatpush1.msra.mxu0 0.0
    %440 = vmatprep.subr.mxu0 0.0
    %441 = vmatpush1.msra.mxu0 0.0
    %442 = vmatprep.subr.mxu0 0.0
    %443 = vmatpush1.msra.mxu0 0.0
    %444 = vmatprep.subr.mxu0 0.0
    %445 = vmatpush1.msra.mxu0 0.0
    %446 = vmatprep.subr.mxu0 0.0
    %447 = vmatpush1.msra.mxu0 0.0
    %448 = vmatprep.subr.mxu0 0.0
    %449 = vmatpush1.msra.mxu0 0.0
    %450 = vmatprep.subr.mxu0 0.0
    %451 = vmatpush1.msra.mxu0 0.0
    %452 = vmatprep.subr.mxu0 0.0
    %453 = vmatpush1.msra.mxu0 0.0
    %454 = vmatprep.subr.mxu0 0.0
    %455 = vmatpush1.msra.mxu0 0.0
    %456 = vmatprep.subr.mxu0 0.0
    %457 = vmatpush1.msra.mxu0 0.0
    %458 = vmatprep.mubr.f32.mxu0 0.0
    %459 = vmatmul.mubr.f32.gmra.mrb[0].mxu0 %v392
    %v460 = vpop.f32.mrb[0].mxu0
    %v461 = vadd.f32 %v390, %v460
    %v462 = vpop.f32.mrb[0].mxu0
    %463 = vdwg.mxu0
    %vm464 = vcmp.gt.f32.partialorder %v461, 0.0
    %v465 = vmul.f32 %v461, 0.2
    %v466 = vsel %vm464, %v461, %v465
    %v467 = vlaneseq
    %v468 = vshrl.u32 %v467, 7
    %v469 = vsub.s32 5, %v468
    %v470 = vrot.slane %v55, %v469
    %v472 = vsel %vm137, %v466, 0
    %474 = vmatprep.subr.mxu0 0.0
    %475 = vmatpush1.msra.mxu0 %v51
    %476 = vmatprep.subr.mxu0 0.0
    %477 = vmatpush1.msra.mxu0 %v52
    %478 = vmatprep.subr.mxu0 0.0
    %479 = vmatpush1.msra.mxu0 %v53
    %480 = vmatprep.subr.mxu0 0.0
    %481 = vmatpush1.msra.mxu0 %v54
    %482 = vmatprep.subr.mxu0 0.0
    %483 = vmatpush1.msra.mxu0 0.0
    %484 = vmatprep.subr.mxu0 0.0
    %485 = vmatpush1.msra.mxu0 0.0
    %486 = vmatprep.subr.mxu0 0.0
    %487 = vmatpush1.msra.mxu0 0.0
    %488 = vmatprep.subr.mxu0 0.0
    %489 = vmatpush1.msra.mxu0 0.0
    %490 = vmatprep.subr.mxu0 0.0
    %491 = vmatpush1.msra.mxu0 0.0
    %492 = vmatprep.subr.mxu0 0.0
    %493 = vmatpush1.msra.mxu0 0.0
    %494 = vmatprep.subr.mxu0 0.0
    %495 = vmatpush1.msra.mxu0 0.0
    %496 = vmatprep.subr.mxu0 0.0
    %497 = vmatpush1.msra.mxu0 0.0
    %498 = vmatprep.subr.mxu0 0.0
    %499 = vmatpush1.msra.mxu0 0.0
    %500 = vmatprep.subr.mxu0 0.0
    %501 = vmatpush1.msra.mxu0 0.0
    %502 = vmatprep.subr.mxu0 0.0
    %503 = vmatpush1.msra.mxu0 0.0
    %504 = vmatprep.subr.mxu0 0.0
    %505 = vmatpush1.msra.mxu0 0.0
    %506 = vmatprep.subr.mxu0 0.0
    %507 = vmatpush1.msra.mxu0 0.0
    %508 = vmatprep.subr.mxu0 0.0
    %509 = vmatpush1.msra.mxu0 0.0
    %510 = vmatprep.subr.mxu0 0.0
    %511 = vmatpush1.msra.mxu0 0.0
    %512 = vmatprep.subr.mxu0 0.0
    %513 = vmatpush1.msra.mxu0 0.0
    %514 = vmatprep.subr.mxu0 0.0
    %515 = vmatpush1.msra.mxu0 0.0
    %516 = vmatprep.subr.mxu0 0.0
    %517 = vmatpush1.msra.mxu0 0.0
    %518 = vmatprep.subr.mxu0 0.0
    %519 = vmatpush1.msra.mxu0 0.0
    %520 = vmatprep.subr.mxu0 0.0
    %521 = vmatpush1.msra.mxu0 0.0
    %522 = vmatprep.subr.mxu0 0.0
    %523 = vmatpush1.msra.mxu0 0.0
    %524 = vmatprep.subr.mxu0 0.0
    %525 = vmatpush1.msra.mxu0 0.0
    %526 = vmatprep.subr.mxu0 0.0
    %527 = vmatpush1.msra.mxu0 0.0
    %528 = vmatprep.subr.mxu0 0.0
    %529 = vmatpush1.msra.mxu0 0.0
    %530 = vmatprep.subr.mxu0 0.0
    %531 = vmatpush1.msra.mxu0 0.0
    %532 = vmatprep.subr.mxu0 0.0
    %533 = vmatpush1.msra.mxu0 0.0
    %534 = vmatprep.subr.mxu0 0.0
    %535 = vmatpush1.msra.mxu0 0.0
    %536 = vmatprep.subr.mxu0 0.0
    %537 = vmatpush1.msra.mxu0 0.0
    %538 = vmatprep.mubr.f32.mxu0 0.0
    %539 = vmatmul.mubr.f32.gmra.mrb[0].mxu0 %v472
    %v540 = vpop.f32.mrb[0].mxu0
    %v541 = vadd.f32 %v470, %v540
    %v542 = vpop.f32.mrb[0].mxu0
    %543 = vdwg.mxu0
    %v544 = vxor.u32 %v541, 2147483648
    %v545 = vmul.f32 %v544, 1.442695
    %v546 = vpow.pop %v545
    %v547 = vadd.f32 %v546, 1.0
    %v548 = vrcp.pop %v547
    %v549 = vmul.f32 1.0, %v548
    %551 = vrot.lane.b32.xlu0 %v289, 32
    %v552 = vpop.permute.xlu0 %551
    %v554 = vsel %vm137, %v549, %v552
    %vm555 = vcmask 277504
    %v556 = vsel %vm555, %v554, %v552
    %vm557 = vcmask 293888
    %v558 = vsel %vm557, %v556, 0.0
    %559 = vst [vmem:[%s2] sm:$0xff] %v558
    // Predicated region
    $region14: #{generator_forward.1} parent=1 // pred_check
      _
    $region15: #{generator_forward.1} parent=1 // pred_check_branch
      %561 = sbr.rel (0) target = $region17
    $region16: #{generator_forward.1} parent=1 // pred_region
      _
    $region17: #{generator_forward.1} parent=1 // pred_fallthru
      _
    // Predicated region
    $region18: #{generator_forward.1} parent=1 // pred_check
      _
    $region19: #{generator_forward.1} parent=1 // pred_check_branch
      %563 = sbr.rel (0) target = $region21
    $region20: #{generator_forward.1} parent=1 // pred_region
      _
    $region21: #{generator_forward.1} parent=1 // pred_fallthru
      _
    %564 = vsyncpa [#allocation3], 1

</llo_original>
